<compile_context>
chip_gen: v6e
topology: v6e:2x2x1
jax: 0.10.0
libtpu: 0.0.40
codegen_flags: <defaults>
</compile_context>

<pallas_src>
import functools

import jax
import jax.numpy as jnp
import numpy as np
from jax import lax
from jax.experimental import pallas as pl
from jax.experimental.pallas import tpu as pltpu


def _cross_layer_kernel(H, W, x1_ref, x2_ref, fuse_ref, w_ref, o1_ref, o2_ref):
    # x1_ref / x2_ref / fuse_ref : (C, H*W)   one batch element, channels on sublanes
    # w_ref                      : (2C, 9*2C) combined block-diagonal LDC im2col weights
    # o1_ref / o2_ref            : (C, H*W)
    C, HW = o1_ref.shape
    assert HW == H * W

    x1 = x1_ref[...]
    x2 = x2_ref[...]
    fuse = fuse_ref[...]

    # Stack both branches on the sublane axis -> one matmul serves both convolutions.
    x = jnp.concatenate([x1, x2], axis=0)                       # (2C, HW)

    # Pre-zero the image-border columns ONCE (2 selects total instead of 6 per-tap):
    #   * taps with kw-1 == -1 read source column W-1 of the adjacent flattened row
    #     when w == 0  -> use the variant with the LAST column zeroed.
    #   * taps with kw-1 == +1 read source column 0 when w == W-1 -> zero FIRST column.
    col = lax.broadcasted_iota(jnp.int32, (2 * C, HW), 1) % W
    x_zl = jnp.where(col >= 1, x, 0.0)       # column 0 zeroed   (feeds dw = +1 taps)
    x_zr = jnp.where(col <= W - 2, x, 0.0)   # column W-1 zeroed (feeds dw = -1 taps)

    # Zero lane-padding of W+1 on each side: every 3x3 tap becomes a static lane-offset
    # slice, and reads that fall off the top/bottom image rows land in the zero pad.
    pad = W + 1
    zpad = jnp.zeros((2 * C, pad), x.dtype)
    xext = jnp.concatenate([zpad, x, zpad], axis=1)             # (2C, HW + 2*(W+1))
    xext_zl = jnp.concatenate([zpad, x_zl, zpad], axis=1)
    xext_zr = jnp.concatenate([zpad, x_zr, zpad], axis=1)

    pieces = []
    for t in range(9):
        dh, dw = t // 3 - 1, t % 3 - 1
        if dh == 0 and dw == 0:
            pieces.append(x)                                    # center tap == input
            continue
        src = xext if dw == 0 else (xext_zr if dw == -1 else xext_zl)
        off = dh * W + dw
        pieces.append(src[:, pad + off:pad + off + HW])         # (2C, HW) static slice
    patches = jnp.concatenate(pieces, axis=0)                   # (9*2C, HW)

    # One im2col MXU matmul for BOTH LDC branches.
    conv = jnp.dot(w_ref[...], patches,
                   preferred_element_type=jnp.float32)          # (2C, HW)

    # Differential_enhance: sigmoid(global_avg_pool(x1 - x2)) gating.
    mean = jnp.sum(x1 - x2, axis=1, keepdims=True) * (1.0 / HW)  # (C, 1)
    g12 = jax.nn.sigmoid(mean)
    g21 = 1.0 - g12                                              # sigmoid(-mean)

    # F_1 = TX_x1 + (w12 * Fuse + x1), F_2 = TX_x2 + (w21 * Fuse + x2)
    o1_ref[...] = (conv[:C, :] + g12 * fuse + x1).astype(o1_ref.dtype)
    o2_ref[...] = (conv[C:, :] + g21 * fuse + x2).astype(o2_ref.dtype)


def ldc_effective_weight(weight_oihw, learnable_mask, theta):
    """Enhancement_texture_LDC's masked weight. Returns (Co, Ci, 3, 3)."""
    center = jnp.zeros((3, 3), weight_oihw.dtype).at[1, 1].set(1.0)
    wsum = weight_oihw.sum(axis=(2, 3))                                    # (Co, Ci)
    mask = 1.0 - theta * learnable_mask[:, :, None, None] \
        * center[None, None, :, :] * wsum[:, :, None, None]
    return weight_oihw * mask


def combined_ldc_weight(w1_eff, w2_eff):
    """Two (Co,Ci,3,3) weights -> (2C, 9*2C) block-diagonal im2col weight.

    Column index = t*2C + (branch*C + ci), t = kh*3 + kw (matches the in-kernel
    patch ordering); row index = branch*C + co.
    """
    Co, Ci = w1_eff.shape[0], w1_eff.shape[1]
    w1_t = jnp.transpose(w1_eff, (2, 3, 0, 1)).reshape(9, Co, Ci)   # [t, co, ci]
    w2_t = jnp.transpose(w2_eff, (2, 3, 0, 1)).reshape(9, Co, Ci)
    z = jnp.zeros_like(w1_t)
    top = jnp.concatenate([w1_t, z], axis=2)        # rows for branch-1 outputs
    bot = jnp.concatenate([z, w2_t], axis=2)        # rows for branch-2 outputs
    blocks = jnp.concatenate([top, bot], axis=1)    # (9, 2C, 2C)
    return jnp.transpose(blocks, (1, 0, 2)).reshape(2 * Co, 9 * 2 * Ci)


def cross_layer_forward(fuse_nchw, x1_nchw, x2_nchw, params):
    B, C, H, W = x1_nchw.shape
    HW = H * W

    # Tiny parameter-only glue (stays in plain JAX).
    w1_eff = ldc_effective_weight(params["w1"], params["m1"], params["theta1"])
    w2_eff = ldc_effective_weight(params["w2"], params["m2"], params["theta2"])
    w_comb = combined_ldc_weight(w1_eff, w2_eff)                   # (2C, 18C)

    # NCHW -> (B, C, H*W): free row-major reshape (no transpose, no pad).
    x1 = x1_nchw.reshape(B, C, HW)
    x2 = x2_nchw.reshape(B, C, HW)
    fuse = fuse_nchw.reshape(B, C, HW)

    img_spec = pl.BlockSpec((pl.Squeezed(), C, HW), lambda b: (b, 0, 0))
    w_spec = pl.BlockSpec((2 * C, 18 * C), lambda b: (0, 0))

    cost = pl.CostEstimate(
        flops=2 * B * (2 * C) * (18 * C) * HW + 10 * B * C * HW,
        transcendentals=B * C,
        bytes_accessed=4 * (5 * B * C * HW + 2 * C * 18 * C))

    o1, o2 = pl.pallas_call(
        functools.partial(_cross_layer_kernel, H, W),
        out_shape=(jax.ShapeDtypeStruct((B, C, HW), x1.dtype),
                   jax.ShapeDtypeStruct((B, C, HW), x2.dtype)),
        grid_spec=pltpu.PrefetchScalarGridSpec(
            num_scalar_prefetch=0,
            grid=(B,),
            in_specs=[img_spec, img_spec, img_spec, w_spec],
            out_specs=[img_spec, img_spec]),
        compiler_params=pltpu.CompilerParams(
            dimension_semantics=("parallel",)),    # batch axis feeds v7x's 2 TCs
        cost_estimate=cost,
    )(x1, x2, fuse, w_comb)

    return o1.reshape(B, C, H, W), o2.reshape(B, C, H, W)


def cross_layer_reference(fuse, x1, x2, params):
    """Pure-JAX NCHW reference reproducing the PyTorch forward."""
    w1_eff = ldc_effective_weight(params["w1"], params["m1"], params["theta1"])
    w2_eff = ldc_effective_weight(params["w2"], params["m2"], params["theta2"])
    dn = ("NCHW", "OIHW", "NCHW")
    tx1 = lax.conv_general_dilated(x1, w1_eff, (1, 1), ((1, 1), (1, 1)),
                                   dimension_numbers=dn)
    tx2 = lax.conv_general_dilated(x2, w2_eff, (1, 1), ((1, 1), (1, 1)),
                                   dimension_numbers=dn)
    mean = jnp.mean(x1 - x2, axis=(2, 3), keepdims=True)
    w12 = jax.nn.sigmoid(mean)
    w21 = jax.nn.sigmoid(-mean)
    return tx1 + w12 * fuse + x1, tx2 + w21 * fuse + x2


if __name__ == "__main__":
    B, C, H, W = 2, 8, 16, 16  # hidden_dim = 8

    key = jax.random.PRNGKey(0)
    k_fuse, k_x1, k_x2, k_w1, k_w2 = jax.random.split(key, 5)

    fuse = jax.random.normal(k_fuse, (B, C, H, W), jnp.float32)
    x1 = jax.random.normal(k_x1, (B, C, H, W), jnp.float32)
    x2 = jax.random.normal(k_x2, (B, C, H, W), jnp.float32)

    # Deterministic parameter init (shapes per Enhancement_texture_LDC.__init__).
    params = {
        "w1": 0.1 * jax.random.normal(k_w1, (C, C, 3, 3), jnp.float32),
        "w2": 0.1 * jax.random.normal(k_w2, (C, C, 3, 3), jnp.float32),
        "m1": jnp.ones((C, C), jnp.float32),          # learnable_mask (init = ones)
        "m2": jnp.ones((C, C), jnp.float32),
        "theta1": jnp.float32(0.5),                   # learnable_theta (init = 0.5)
        "theta2": jnp.float32(0.5),
        # NOTE: Differential_enhance.lastconv is never used in forward -> omitted.
    }

    f1, f2 = jax.jit(cross_layer_forward)(fuse, x1, x2, params)
    jax.block_until_ready((f1, f2))

    r1, r2 = cross_layer_reference(fuse, x1, x2, params)
    np.testing.assert_allclose(np.asarray(f1), np.asarray(r1), rtol=1e-5, atol=1e-5)
    np.testing.assert_allclose(np.asarray(f2), np.asarray(r2), rtol=1e-5, atol=1e-5)

    print("KERNEL_OK")
</pallas_src>

<mosaic_0001>
module attributes {stable_mosaic.version = 11 : i64} {
  func.func @_cross_layer_kernel(%arg0: i32, %arg1: memref<1x8x256xf32, #tpu.memory_space<vmem>>, %arg2: memref<1x8x256xf32, #tpu.memory_space<vmem>>, %arg3: memref<1x8x256xf32, #tpu.memory_space<vmem>>, %arg4: memref<16x144xf32, #tpu.memory_space<vmem>>, %arg5: memref<1x8x256xf32, #tpu.memory_space<vmem>>, %arg6: memref<1x8x256xf32, #tpu.memory_space<vmem>>) attributes {dimension_semantics = [#tpu.dimension_semantics<parallel>], iteration_bounds = array<i64: 2>, scalar_prefetch = 0 : i64, scratch_operands = 0 : i64, tpu.core_type = #tpu.core_type<tc>, window_params = [{transform_indices = @transform_0, window_bounds = array<i64: 1, 8, 256>}, {transform_indices = @transform_1, window_bounds = array<i64: 1, 8, 256>}, {transform_indices = @transform_2, window_bounds = array<i64: 1, 8, 256>}, {pipeline_mode = #tpu.pipeline_mode<synchronous>, transform_indices = @transform_3, window_bounds = array<i64: 16, 144>}, {transform_indices = @transform_4, window_bounds = array<i64: 1, 8, 256>}, {transform_indices = @transform_5, window_bounds = array<i64: 1, 8, 256>}]} {
    %c0 = arith.constant 0 : index
    %c0_0 = arith.constant 0 : index
    %c0_1 = arith.constant 0 : index
    %0 = vector.load %arg1[%c0, %c0_0, %c0_1] : memref<1x8x256xf32, #tpu.memory_space<vmem>>, vector<1x8x256xf32>
    %1 = vector.shape_cast %0 : vector<1x8x256xf32> to vector<8x256xf32>
    %c0_2 = arith.constant 0 : index
    %c0_3 = arith.constant 0 : index
    %c0_4 = arith.constant 0 : index
    %2 = vector.load %arg2[%c0_2, %c0_3, %c0_4] : memref<1x8x256xf32, #tpu.memory_space<vmem>>, vector<1x8x256xf32>
    %3 = vector.shape_cast %2 : vector<1x8x256xf32> to vector<8x256xf32>
    %c0_5 = arith.constant 0 : index
    %c0_6 = arith.constant 0 : index
    %c0_7 = arith.constant 0 : index
    %4 = vector.load %arg3[%c0_5, %c0_6, %c0_7] : memref<1x8x256xf32, #tpu.memory_space<vmem>>, vector<1x8x256xf32>
    %5 = vector.shape_cast %4 : vector<1x8x256xf32> to vector<8x256xf32>
    %6 = tpu.concatenate %1, %3 in 0 : vector<8x256xf32>, vector<8x256xf32> -> vector<16x256xf32>
    %7 = tpu.iota {dimensions = array<i32: 1>} : vector<16x256xi32>
    %c16_i32 = arith.constant 16 : i32
    %c0_i32 = arith.constant 0 : i32
    %8 = arith.cmpi eq, %c16_i32, %c0_i32 : i32
    %c1_i32 = arith.constant 1 : i32
    %9 = arith.select %8, %c1_i32, %c16_i32 : i32
    %10 = vector.broadcast %9 : i32 to vector<16x256xi32>
    %11 = arith.remsi %7, %10 : vector<16x256xi32>
    %c0_i32_8 = arith.constant 0 : i32
    %12 = vector.broadcast %c0_i32_8 : i32 to vector<16x256xi32>
    %13 = arith.cmpi ne, %11, %12 : vector<16x256xi32>
    %c0_i32_9 = arith.constant 0 : i32
    %14 = vector.broadcast %c0_i32_9 : i32 to vector<16x256xi32>
    %15 = arith.cmpi slt, %11, %14 : vector<16x256xi32>
    %c0_i32_10 = arith.constant 0 : i32
    %16 = arith.cmpi slt, %9, %c0_i32_10 : i32
    %17 = vector.broadcast %16 : i1 to vector<16x256xi1>
    %18 = vector.broadcast %17 : vector<16x256xi1> to vector<16x256xi1>
    %19 = arith.xori %15, %18 : vector<16x256xi1>
    %20 = arith.andi %19, %13 : vector<16x256xi1>
    %21 = vector.broadcast %9 : i32 to vector<16x256xi32>
    %22 = arith.addi %11, %21 : vector<16x256xi32>
    %23 = arith.select %20, %22, %11 : vector<16x256xi1>, vector<16x256xi32>
    %c1_i32_11 = arith.constant 1 : i32
    %24 = vector.broadcast %c1_i32_11 : i32 to vector<16x256xi32>
    %25 = arith.cmpi sge, %23, %24 : vector<16x256xi32>
    %cst = arith.constant 0.000000e+00 : f32
    %26 = vector.broadcast %cst : f32 to vector<16x256xf32>
    %27 = arith.select %25, %6, %26 : vector<16x256xi1>, vector<16x256xf32>
    %c14_i32 = arith.constant 14 : i32
    %28 = vector.broadcast %c14_i32 : i32 to vector<16x256xi32>
    %29 = arith.cmpi sle, %23, %28 : vector<16x256xi32>
    %cst_12 = arith.constant 0.000000e+00 : f32
    %30 = vector.broadcast %cst_12 : f32 to vector<16x256xf32>
    %31 = arith.select %29, %6, %30 : vector<16x256xi1>, vector<16x256xf32>
    %cst_13 = arith.constant 0.000000e+00 : f32
    %32 = vector.broadcast %cst_13 : f32 to vector<16x17xf32>
    %33 = tpu.concatenate %32, %6, %32 in 1 : vector<16x17xf32>, vector<16x256xf32>, vector<16x17xf32> -> vector<16x290xf32>
    %34 = tpu.concatenate %32, %27, %32 in 1 : vector<16x17xf32>, vector<16x256xf32>, vector<16x17xf32> -> vector<16x290xf32>
    %35 = tpu.concatenate %32, %31, %32 in 1 : vector<16x17xf32>, vector<16x256xf32>, vector<16x17xf32> -> vector<16x290xf32>
    %36 = vector.extract_strided_slice %35 {offsets = [0, 0], sizes = [16, 256], strides = [1, 1]} : vector<16x290xf32> to vector<16x256xf32>
    %37 = vector.extract_strided_slice %33 {offsets = [0, 1], sizes = [16, 256], strides = [1, 1]} : vector<16x290xf32> to vector<16x256xf32>
    %38 = vector.extract_strided_slice %34 {offsets = [0, 2], sizes = [16, 256], strides = [1, 1]} : vector<16x290xf32> to vector<16x256xf32>
    %39 = vector.extract_strided_slice %35 {offsets = [0, 16], sizes = [16, 256], strides = [1, 1]} : vector<16x290xf32> to vector<16x256xf32>
    %40 = vector.extract_strided_slice %34 {offsets = [0, 18], sizes = [16, 256], strides = [1, 1]} : vector<16x290xf32> to vector<16x256xf32>
    %41 = vector.extract_strided_slice %35 {offsets = [0, 32], sizes = [16, 256], strides = [1, 1]} : vector<16x290xf32> to vector<16x256xf32>
    %42 = vector.extract_strided_slice %33 {offsets = [0, 33], sizes = [16, 256], strides = [1, 1]} : vector<16x290xf32> to vector<16x256xf32>
    %43 = vector.extract_strided_slice %34 {offsets = [0, 34], sizes = [16, 256], strides = [1, 1]} : vector<16x290xf32> to vector<16x256xf32>
    %44 = tpu.concatenate %36, %37, %38, %39, %6, %40, %41, %42, %43 in 0 : vector<16x256xf32>, vector<16x256xf32>, vector<16x256xf32>, vector<16x256xf32>, vector<16x256xf32>, vector<16x256xf32>, vector<16x256xf32>, vector<16x256xf32>, vector<16x256xf32> -> vector<144x256xf32>
    %c0_14 = arith.constant 0 : index
    %c0_15 = arith.constant 0 : index
    %45 = vector.load %arg4[%c0_14, %c0_15] : memref<16x144xf32, #tpu.memory_space<vmem>>, vector<16x144xf32>
    %cst_16 = arith.constant dense<0.000000e+00> : vector<16x256xf32>
    %46 = tpu.matmul %45, %44, %cst_16 {dimension_numbers = #tpu.dot_dimension_numbers<[1], [0], [0], [1], [0, 0, 1, 1], [], []>} : vector<16x144xf32>, vector<144x256xf32>, vector<16x256xf32> -> vector<16x256xf32>
    %47 = arith.subf %1, %3 : vector<8x256xf32>
    %cst_17 = arith.constant dense<0.000000e+00> : vector<8xf32>
    %48 = vector.multi_reduction <add>, %47, %cst_17 [1] : vector<8x256xf32> to vector<8xf32>
    %49 = vector.shape_cast %48 : vector<8xf32> to vector<8x1xf32>
    %cst_18 = arith.constant 3.906250e-03 : f32
    %50 = vector.broadcast %cst_18 : f32 to vector<8x1xf32>
    %51 = arith.mulf %49, %50 : vector<8x1xf32>
    %52 = arith.negf %51 : vector<8x1xf32>
    %53 = math.exp %52 : vector<8x1xf32>
    %cst_19 = arith.constant 1.000000e+00 : f32
    %54 = vector.broadcast %cst_19 : f32 to vector<8x1xf32>
    %55 = arith.addf %54, %53 : vector<8x1xf32>
    %56 = arith.divf %54, %55 : vector<8x1xf32>
    %cst_20 = arith.constant 1.000000e+00 : f32
    %57 = vector.broadcast %cst_20 : f32 to vector<8x1xf32>
    %58 = arith.subf %57, %56 : vector<8x1xf32>
    %59 = vector.extract_strided_slice %46 {offsets = [0, 0], sizes = [8, 256], strides = [1, 1]} : vector<16x256xf32> to vector<8x256xf32>
    %60 = vector.broadcast %56 : vector<8x1xf32> to vector<8x256xf32>
    %61 = arith.mulf %60, %5 : vector<8x256xf32>
    %62 = arith.addf %59, %61 : vector<8x256xf32>
    %63 = arith.addf %62, %1 : vector<8x256xf32>
    %c0_21 = arith.constant 0 : index
    %c0_22 = arith.constant 0 : index
    %c0_23 = arith.constant 0 : index
    %64 = vector.load %arg5[%c0_21, %c0_22, %c0_23] : memref<1x8x256xf32, #tpu.memory_space<vmem>>, vector<1x8x256xf32>
    %65 = vector.shape_cast %64 : vector<1x8x256xf32> to vector<8x256xf32>
    %66 = vector.shape_cast %63 : vector<8x256xf32> to vector<1x8x256xf32>
    tpu.vector_store %arg5[%c0_21, %c0_22, %c0_23], %66 {strides = array<i32>} : memref<1x8x256xf32, #tpu.memory_space<vmem>>, vector<1x8x256xf32>,
    %67 = vector.extract_strided_slice %46 {offsets = [8, 0], sizes = [8, 256], strides = [1, 1]} : vector<16x256xf32> to vector<8x256xf32>
    %68 = vector.broadcast %58 : vector<8x1xf32> to vector<8x256xf32>
    %69 = arith.mulf %68, %5 : vector<8x256xf32>
    %70 = arith.addf %67, %69 : vector<8x256xf32>
    %71 = arith.addf %70, %3 : vector<8x256xf32>
    %c0_24 = arith.constant 0 : index
    %c0_25 = arith.constant 0 : index
    %c0_26 = arith.constant 0 : index
    %72 = vector.load %arg6[%c0_24, %c0_25, %c0_26] : memref<1x8x256xf32, #tpu.memory_space<vmem>>, vector<1x8x256xf32>
    %73 = vector.shape_cast %72 : vector<1x8x256xf32> to vector<8x256xf32>
    %74 = vector.shape_cast %71 : vector<8x256xf32> to vector<1x8x256xf32>
    tpu.vector_store %arg6[%c0_24, %c0_25, %c0_26], %74 {strides = array<i32>} : memref<1x8x256xf32, #tpu.memory_space<vmem>>, vector<1x8x256xf32>,
    return
  }
  func.func @transform_0(%arg0: i32) -> (i32, i32, i32) {
    %c0_i32 = arith.constant 0 : i32
    %c0_i32_0 = arith.constant 0 : i32
    %c0_i32_1 = arith.constant 0 : i32
    return %arg0, %c0_i32, %c0_i32_0 : i32, i32, i32
  }
  func.func @transform_1(%arg0: i32) -> (i32, i32, i32) {
    %c0_i32 = arith.constant 0 : i32
    %c0_i32_0 = arith.constant 0 : i32
    %c0_i32_1 = arith.constant 0 : i32
    return %arg0, %c0_i32, %c0_i32_0 : i32, i32, i32
  }
  func.func @transform_2(%arg0: i32) -> (i32, i32, i32) {
    %c0_i32 = arith.constant 0 : i32
    %c0_i32_0 = arith.constant 0 : i32
    %c0_i32_1 = arith.constant 0 : i32
    return %arg0, %c0_i32, %c0_i32_0 : i32, i32, i32
  }
  func.func @transform_3(%arg0: i32) -> (i32, i32) {
    %c0_i32 = arith.constant 0 : i32
    %c0_i32_0 = arith.constant 0 : i32
    %c0_i32_1 = arith.constant 0 : i32
    return %c0_i32, %c0_i32_0 : i32, i32
  }
  func.func @transform_4(%arg0: i32) -> (i32, i32, i32) {
    %c0_i32 = arith.constant 0 : i32
    %c0_i32_0 = arith.constant 0 : i32
    %c0_i32_1 = arith.constant 0 : i32
    return %arg0, %c0_i32, %c0_i32_0 : i32, i32, i32
  }
  func.func @transform_5(%arg0: i32) -> (i32, i32, i32) {
    %c0_i32 = arith.constant 0 : i32
    %c0_i32_0 = arith.constant 0 : i32
    %c0_i32_1 = arith.constant 0 : i32
    return %arg0, %c0_i32, %c0_i32_0 : i32, i32, i32
  }
}

</mosaic_0001>

<llo_original>
// kernel: cross_layer_forward.1
$region0: #{cross_layer_forward.1}
  #allocation0 [shape = 'u32[]', space=smem, size = 0x4, offset = 0x4, fixed_abs, tag = 'smem constant byte address 0x4 - core index']
  #allocation1 [shape = 'u32[144,128]{1,0:T(1,128)}', space=vmem, size = 0x12000, scoped, tag = 'internal scratch']
  %s0 = inlined_call_operand.vmem [shape: f32[2,8,256], index: 0, kind: input, shape index: {}]
  %s1 = inlined_call_operand.vmem [shape: f32[2,8,256], index: 1, kind: input, shape index: {}]
  %s2 = inlined_call_operand.vmem [shape: f32[2,8,256], index: 2, kind: input, shape index: {}]
  %s3 = inlined_call_operand.vmem [shape: f32[16,144], index: 3, kind: input, shape index: {}]
  %s4 = inlined_call_operand.vmem [shape: f32[2,8,256], index: 4, kind: output, shape index: {0}]
  %s5 = inlined_call_operand.vmem [shape: f32[2,8,256], index: 5, kind: output, shape index: {1}]
  %6 = xla_tuple %s4, %s5
  %s7 = sld [smem:[#allocation0]]
  $region57: #{cross_layer_forward.1} parent=0
    _
  %s9 = ssub.s32 1, %s7
  %s10 = scalar_select 0, %s9, %s7
  loop: start=0, step=1, limit=4
  $region2: #{cross_layer_forward.1} parent=0 // loop_pre_header
    _
  $region3: #{cross_layer_forward.1} parent=0 // loop_header
    %s12 = sphi 0, %s16
    %p13 = scmp.ge.s32.totalorder %s12, 4
    %s22 = sphi 0, %s24
    %s25 = sphi 0, %s22
    %s26 = sphi 0, %s25
    %s42 = sphi 0, %s26
    %s48 = sphi 0, %s50
    %s51 = sphi 0, %s48
    %s52 = sphi 0, %s51
    %s68 = sphi 0, %s52
    %s74 = sphi 0, %s76
    %s77 = sphi 0, %s74
    %s78 = sphi 0, %s77
    %s94 = sphi 0, %s78
    %s98 = sphi 0, %s98
    %s100 = sphi 0, %s98
    %s101 = sphi 0, %s100
    %s115 = sphi 0, %s101
    %s121 = sphi 0, %s123
    %s124 = sphi 0, %s121
    %s125 = sphi 0, %s124
    %s141 = sphi 0, %s125
    %s147 = sphi 0, %s149
    %s150 = sphi 0, %s147
    %s151 = sphi 0, %s150
    %s167 = sphi 0, %s151
  $region4: #{cross_layer_forward.1} parent=0 // loop_header_branch
    %15 = sbr.rel (%p13) target = $region8
  $region5: #{cross_layer_forward.1} parent=0 // loop_body
    %s17 = ssub.s32 %s12, 1
    %s18 = ssub.s32 %s12, 2
    %s19 = sadd.s32 %s12, 1
    %s20 = ssub.s32 %s12, %s19
    %p21 = scmp.eq.s32.totalorder %s20, 0
    %s23 = sadd.s32 %s22, 1
    %s24 = scalar_select %p21, %s22, %s23
    %p27 = pneg %p21
    %p28 = scmp.eq.s32.totalorder %s12, 1
    %p29 = por %p27, %p28
    %p30 = scmp.ne.s32.totalorder %s22, %s25
    %p31 = scmp.eq.s32.totalorder %s12, 0
    %p32 = por %p30, %p31
    %p33 = scmp.ne.s32.totalorder %s22, %s25
    %p34 = scmp.eq.s32.totalorder %s17, 1
    %p35 = por %p33, %p34
    %p36 = scmp.ne.s32.totalorder %s25, %s26
    %p37 = scmp.eq.s32.totalorder %s17, 0
    %p38 = por %p36, %p37
    %p39 = scmp.ne.s32.totalorder %s25, %s26
    %p40 = scmp.eq.s32.totalorder %s18, 1
    %p41 = por %p39, %p40
    %p43 = scmp.ne.s32.totalorder %s26, %s42
    %p44 = scmp.eq.s32.totalorder %s18, 0
    %p45 = por %p43, %p44
    %s46 = ssub.s32 %s12, %s19
    %p47 = scmp.eq.s32.totalorder %s46, 0
    %s49 = sadd.s32 %s48, 1
    %s50 = scalar_select %p47, %s48, %s49
    %p53 = pneg %p47
    %p54 = scmp.eq.s32.totalorder %s12, 1
    %p55 = por %p53, %p54
    %p56 = scmp.ne.s32.totalorder %s48, %s51
    %p57 = scmp.eq.s32.totalorder %s12, 0
    %p58 = por %p56, %p57
    %p59 = scmp.ne.s32.totalorder %s48, %s51
    %p60 = scmp.eq.s32.totalorder %s17, 1
    %p61 = por %p59, %p60
    %p62 = scmp.ne.s32.totalorder %s51, %s52
    %p63 = scmp.eq.s32.totalorder %s17, 0
    %p64 = por %p62, %p63
    %p65 = scmp.ne.s32.totalorder %s51, %s52
    %p66 = scmp.eq.s32.totalorder %s18, 1
    %p67 = por %p65, %p66
    %p69 = scmp.ne.s32.totalorder %s52, %s68
    %p70 = scmp.eq.s32.totalorder %s18, 0
    %p71 = por %p69, %p70
    %s72 = ssub.s32 %s12, %s19
    %p73 = scmp.eq.s32.totalorder %s72, 0
    %s75 = sadd.s32 %s74, 1
    %s76 = scalar_select %p73, %s74, %s75
    %p79 = pneg %p73
    %p80 = scmp.eq.s32.totalorder %s12, 1
    %p81 = por %p79, %p80
    %p82 = scmp.ne.s32.totalorder %s74, %s77
    %p83 = scmp.eq.s32.totalorder %s12, 0
    %p84 = por %p82, %p83
    %p85 = scmp.ne.s32.totalorder %s74, %s77
    %p86 = scmp.eq.s32.totalorder %s17, 1
    %p87 = por %p85, %p86
    %p88 = scmp.ne.s32.totalorder %s77, %s78
    %p89 = scmp.eq.s32.totalorder %s17, 0
    %p90 = por %p88, %p89
    %p91 = scmp.ne.s32.totalorder %s77, %s78
    %p92 = scmp.eq.s32.totalorder %s18, 1
    %p93 = por %p91, %p92
    %p95 = scmp.ne.s32.totalorder %s78, %s94
    %p96 = scmp.eq.s32.totalorder %s18, 0
    %p97 = por %p95, %p96
    %s99 = sadd.s32 %s98, 1
    %p102 = scmp.eq.s32.totalorder %s12, 1
    %p103 = scmp.ne.s32.totalorder %s98, %s100
    %p104 = scmp.eq.s32.totalorder %s12, 0
    %p105 = por %p103, %p104
    %p106 = scmp.ne.s32.totalorder %s98, %s100
    %p107 = scmp.eq.s32.totalorder %s17, 1
    %p108 = por %p106, %p107
    %p109 = scmp.ne.s32.totalorder %s100, %s101
    %p110 = scmp.eq.s32.totalorder %s17, 0
    %p111 = por %p109, %p110
    %p112 = scmp.ne.s32.totalorder %s100, %s101
    %p113 = scmp.eq.s32.totalorder %s18, 1
    %p114 = por %p112, %p113
    %p116 = scmp.ne.s32.totalorder %s101, %s115
    %p117 = scmp.eq.s32.totalorder %s18, 0
    %p118 = por %p116, %p117
    %s119 = ssub.s32 %s12, %s19
    %p120 = scmp.eq.s32.totalorder %s119, 0
    %s122 = sadd.s32 %s121, 1
    %s123 = scalar_select %p120, %s121, %s122
    %p126 = pneg %p120
    %p127 = scmp.eq.s32.totalorder %s12, 1
    %p128 = por %p126, %p127
    %p129 = scmp.ne.s32.totalorder %s121, %s124
    %p130 = scmp.eq.s32.totalorder %s12, 0
    %p131 = por %p129, %p130
    %p132 = scmp.ne.s32.totalorder %s121, %s124
    %p133 = scmp.eq.s32.totalorder %s17, 1
    %p134 = por %p132, %p133
    %p135 = scmp.ne.s32.totalorder %s124, %s125
    %p136 = scmp.eq.s32.totalorder %s17, 0
    %p137 = por %p135, %p136
    %p138 = scmp.ne.s32.totalorder %s124, %s125
    %p139 = scmp.eq.s32.totalorder %s18, 1
    %p140 = por %p138, %p139
    %p142 = scmp.ne.s32.totalorder %s125, %s141
    %p143 = scmp.eq.s32.totalorder %s18, 0
    %p144 = por %p142, %p143
    %s145 = ssub.s32 %s12, %s19
    %p146 = scmp.eq.s32.totalorder %s145, 0
    %s148 = sadd.s32 %s147, 1
    %s149 = scalar_select %p146, %s147, %s148
    %p152 = pneg %p146
    %p153 = scmp.eq.s32.totalorder %s12, 1
    %p154 = por %p152, %p153
    %p155 = scmp.ne.s32.totalorder %s147, %s150
    %p156 = scmp.eq.s32.totalorder %s12, 0
    %p157 = por %p155, %p156
    %p158 = scmp.ne.s32.totalorder %s147, %s150
    %p159 = scmp.eq.s32.totalorder %s17, 1
    %p160 = por %p158, %p159
    %p161 = scmp.ne.s32.totalorder %s150, %s151
    %p162 = scmp.eq.s32.totalorder %s17, 0
    %p163 = por %p161, %p162
    %p164 = scmp.ne.s32.totalorder %s150, %s151
    %p165 = scmp.eq.s32.totalorder %s18, 1
    %p166 = por %p164, %p165
    %p168 = scmp.ne.s32.totalorder %s151, %s167
    %p169 = scmp.eq.s32.totalorder %s18, 0
    %p170 = por %p168, %p169
    %p171 = scmp.le.s32.totalorder 1, %s12
    %p172 = scmp.lt.s32.totalorder %s12, 3
    %p173 = pnand %p171, %p172
    %p174 = pneg %p173
    // Predicated region
    $region9: #{cross_layer_forward.1} parent=5 // pred_check
      _
    $region10: #{cross_layer_forward.1} parent=5 // pred_check_branch
      %176 = sbr.rel (%p173) target = $region12
    $region11: #{cross_layer_forward.1} parent=5 // pred_region
      %s177 = ssub.s32 %s12, 1
      // Predicated region
      $region13: #{cross_layer_forward.1} parent=11 // pred_check
        %p178 = pneg %p111
      $region14: #{cross_layer_forward.1} parent=11 // pred_check_branch
        %180 = sbr.rel (%p178) target = $region16
      $region15: #{cross_layer_forward.1} parent=11 // pred_region
        _
      $region16: #{cross_layer_forward.1} parent=11 // pred_fallthru
        _
    $region12: #{cross_layer_forward.1} parent=5 // pred_fallthru
      _
    %p181 = scmp.lt.s32.totalorder %s12, 2
    // Predicated region
    $region17: #{cross_layer_forward.1} parent=5 // pred_check
      %p182 = pneg %p181
    $region18: #{cross_layer_forward.1} parent=5 // pred_check_branch
      %184 = sbr.rel (%p182) target = $region20
    $region19: #{cross_layer_forward.1} parent=5 // pred_region
      // Predicated region
      $region21: #{cross_layer_forward.1} parent=19 // pred_check
        %p185 = pneg %p32
      $region22: #{cross_layer_forward.1} parent=19 // pred_check_branch
        %187 = sbr.rel (%p185) target = $region24
      $region23: #{cross_layer_forward.1} parent=19 // pred_region
        %p188 = scmp.lt.s32.totalorder %s12, 1
        %s189 = scalar_select %p188, %s12, 1
        %s190 = smul.addr %s189, 2
        %s191 = smul.addr %s190, 8
        %s192 = scalar_lea.vmem %s0, %s191
      $region24: #{cross_layer_forward.1} parent=19 // pred_fallthru
        _
      // Predicated region
      $region25: #{cross_layer_forward.1} parent=19 // pred_check
        %p193 = pneg %p58
      $region26: #{cross_layer_forward.1} parent=19 // pred_check_branch
        %195 = sbr.rel (%p193) target = $region28
      $region27: #{cross_layer_forward.1} parent=19 // pred_region
        %p196 = scmp.lt.s32.totalorder %s12, 1
        %s197 = scalar_select %p196, %s12, 1
        %s198 = smul.addr %s197, 2
        %s199 = smul.addr %s198, 8
        %s200 = scalar_lea.vmem %s1, %s199
      $region28: #{cross_layer_forward.1} parent=19 // pred_fallthru
        _
      // Predicated region
      $region29: #{cross_layer_forward.1} parent=19 // pred_check
        %p201 = pneg %p84
      $region30: #{cross_layer_forward.1} parent=19 // pred_check_branch
        %203 = sbr.rel (%p201) target = $region32
      $region31: #{cross_layer_forward.1} parent=19 // pred_region
        %p204 = scmp.lt.s32.totalorder %s12, 1
        %s205 = scalar_select %p204, %s12, 1
        %s206 = smul.addr %s205, 2
        %s207 = smul.addr %s206, 8
        %s208 = scalar_lea.vmem %s2, %s207
      $region32: #{cross_layer_forward.1} parent=19 // pred_fallthru
        _
    $region20: #{cross_layer_forward.1} parent=5 // pred_fallthru
      _
    %p209 = scmp.le.s32.totalorder 1, %s12
    %p210 = scmp.lt.s32.totalorder %s12, 3
    %p211 = pnand %p209, %p210
    %p212 = pneg %p211
    // Predicated region
    $region33: #{cross_layer_forward.1} parent=5 // pred_check
      _
    $region34: #{cross_layer_forward.1} parent=5 // pred_check_branch
      %214 = sbr.rel (%p211) target = $region36
    $region35: #{cross_layer_forward.1} parent=5 // pred_region
      %s215 = ssub.s32 %s12, 1
      %p216 = scmp.lt.s32.totalorder %s17, 1
      %s217 = scalar_select %p216, %s17, 1
      %s218 = smul.addr %s217, 2
      %s219 = smul.addr %s218, 8
      %s220 = scalar_lea.vmem %s0, %s219
      %p221 = pneg %p38
      %p222 = pneg %p35
      %p223 = scmp.lt.s32.totalorder %s17, 1
      %s224 = scalar_select %p223, %s17, 1
      %s225 = smul.addr %s224, 2
      %s226 = smul.addr %s225, 8
      %s227 = scalar_lea.vmem %s1, %s226
      %p228 = pneg %p64
      %p229 = pneg %p61
      %p230 = scmp.lt.s32.totalorder %s17, 1
      %s231 = scalar_select %p230, %s17, 1
      %s232 = smul.addr %s231, 2
      %s233 = smul.addr %s232, 8
      %s234 = scalar_lea.vmem %s2, %s233
      %p235 = pneg %p90
      %p236 = pneg %p87
      %p237 = pneg %p111
      %p238 = pneg %p108
      %p239 = pneg %p137
      %p240 = pneg %p134
      %p241 = scmp.lt.s32.totalorder %s17, 1
      %s242 = scalar_select %p241, %s17, 1
      %s243 = smul.addr %s242, 2
      %s244 = smul.addr %s243, 8
      %s245 = scalar_lea.vmem %s4, %s244
      %p246 = pneg %p163
      %p247 = pneg %p160
      %p248 = scmp.lt.s32.totalorder %s17, 1
      %s249 = scalar_select %p248, %s17, 1
      %s250 = smul.addr %s249, 2
      %s251 = smul.addr %s250, 8
      %s252 = scalar_lea.vmem %s5, %s251
      %p253 = scmp.lt.s32.totalorder %s17, 1
      %s254 = scalar_select %p253, %s17, 1
      %s255 = smul.addr %s254, 2
      %s256 = smul.addr %s255, 8
      %s257 = scalar_lea.vmem %s0, %s256
      %p258 = scmp.lt.s32.totalorder %s17, 1
      %s259 = scalar_select %p258, %s17, 1
      %s260 = smul.addr %s259, 2
      %s261 = smul.addr %s260, 8
      %s262 = scalar_lea.vmem %s1, %s261
      %p263 = scmp.lt.s32.totalorder %s17, 1
      %s264 = scalar_select %p263, %s17, 1
      %s265 = smul.addr %s264, 2
      %s266 = smul.addr %s265, 8
      %s267 = scalar_lea.vmem %s2, %s266
      %p268 = scmp.lt.s32.totalorder %s17, 1
      %s269 = scalar_select %p268, %s17, 1
      %s270 = smul.addr %s269, 2
      %s271 = smul.addr %s270, 8
      %s272 = scalar_lea.vmem %s4, %s271
      %p273 = scmp.lt.s32.totalorder %s17, 1
      %s274 = scalar_select %p273, %s17, 1
      %s275 = smul.addr %s274, 2
      %s276 = smul.addr %s275, 8
      %s277 = scalar_lea.vmem %s5, %s276
      %v278 = vld [vmem:[%s257] sm:$0xff]
      %v279 = vld [vmem:[%s257 + $0x8] sm:$0xff]
      %v280 = vld [vmem:[%s262] sm:$0xff]
      %v281 = vld [vmem:[%s262 + $0x8] sm:$0xff]
      %v282 = vld [vmem:[%s267] sm:$0xff]
      %v283 = vld [vmem:[%s267 + $0x8] sm:$0xff]
      %v284 = vlaneseq
      %v285 = vand.u32 %v284, 127
      %v286 = vadd.s32 %v285, 128
      %vm287 = vcmp.lt.s32.totalorder %v285, 0
      %v288 = vsub.s32 0, %v285
      %v289 = vsel %vm287, %v288, %v285
      %v290 = vshrl.u32 %v289, 4
      %v291 = vand.u32 %v289, 15
      %v292 = vsub.s32 0, %v291
      %v293 = vsel %vm287, %v292, %v291
      %vm294 = vcmp.lt.s32.totalorder %v286, 0
      %v295 = vsub.s32 0, %v286
      %v296 = vsel %vm294, %v295, %v286
      %v297 = vshrl.u32 %v296, 4
      %v298 = vand.u32 %v296, 15
      %v299 = vsub.s32 0, %v298
      %v300 = vsel %vm294, %v299, %v298
      %vm301 = vcmp.ne.s32.totalorder %v293, 0
      %vm302 = vcmp.ne.s32.totalorder %v300, 0
      %vm303 = vcmp.lt.s32.totalorder %v293, 0
      %vm304 = vcmp.lt.s32.totalorder %v300, 0
      %vm305 = vmand %vm303, %vm301
      %vm306 = vmand %vm304, %vm302
      %v307 = vadd.s32 %v293, 16
      %v308 = vadd.s32 %v300, 16
      %v309 = vsel %vm305, %v307, %v293
      %v310 = vsel %vm306, %v308, %v300
      %vm311 = vcmp.ge.s32.totalorder %v309, 1
      %vm312 = vcmp.ge.s32.totalorder %v310, 1
      %v313 = vsel %vm311, %v278, 0.0
      %v314 = vsel %vm312, %v279, 0.0
      %v315 = vsel %vm311, %v280, 0.0
      %v316 = vsel %vm312, %v281, 0.0
      %vm317 = vcmp.le.s32.totalorder %v309, 14
      %vm318 = vcmp.le.s32.totalorder %v310, 14
      %v319 = vsel %vm317, %v278, 0.0
      %v320 = vsel %vm318, %v279, 0.0
      %v321 = vsel %vm317, %v280, 0.0
      %v322 = vsel %vm318, %v281, 0.0
      %327 = vrot.lane.b32.xlu0 %v278, 17
      %v328 = vpop.permute.xlu0 %327
      %329 = vrot.lane.b32.xlu0 %v279, 17
      %v330 = vpop.permute.xlu0 %329
      %331 = vrot.lane.b32.xlu0 %v280, 17
      %v332 = vpop.permute.xlu0 %331
      %333 = vrot.lane.b32.xlu0 %v281, 17
      %v334 = vpop.permute.xlu0 %333
      %vm335 = vcmask 138240
      %v336 = vsel %vm335, %v328, %v330
      %v337 = vsel %vm335, %v332, %v334
      %v342 = vsel %vm335, 0.0, %v328
      %v343 = vsel %vm335, 0.0, %v332
      %v344 = vsel %vm335, %v330, 0.0
      %v345 = vsel %vm335, %v334, 0.0
      %350 = vrot.lane.b32.xlu0 %v313, 17
      %v351 = vpop.permute.xlu0 %350
      %352 = vrot.lane.b32.xlu0 %v314, 17
      %v353 = vpop.permute.xlu0 %352
      %354 = vrot.lane.b32.xlu0 %v315, 17
      %v355 = vpop.permute.xlu0 %354
      %356 = vrot.lane.b32.xlu0 %v316, 17
      %v357 = vpop.permute.xlu0 %356
      %v358 = vsel %vm335, %v351, %v353
      %v359 = vsel %vm335, %v355, %v357
      %v364 = vsel %vm335, 0.0, %v351
      %v365 = vsel %vm335, 0.0, %v355
      %v366 = vsel %vm335, %v353, 0.0
      %v367 = vsel %vm335, %v357, 0.0
      %372 = vrot.lane.b32.xlu0 %v319, 17
      %v373 = vpop.permute.xlu0 %372
      %374 = vrot.lane.b32.xlu0 %v320, 17
      %v375 = vpop.permute.xlu0 %374
      %376 = vrot.lane.b32.xlu0 %v321, 17
      %v377 = vpop.permute.xlu0 %376
      %378 = vrot.lane.b32.xlu0 %v322, 17
      %v379 = vpop.permute.xlu0 %378
      %v380 = vsel %vm335, %v373, %v375
      %v381 = vsel %vm335, %v377, %v379
      %v388 = vsel %vm335, 0.0, %v373
      %v389 = vsel %vm335, 0.0, %v377
      %v390 = vsel %vm335, %v375, 0.0
      %v391 = vsel %vm335, %v379, 0.0
      %396 = vrot.lane.b32.xlu0 %v342, 127
      %v397 = vpop.permute.xlu0 %396
      %398 = vrot.lane.b32.xlu0 %v336, 127
      %v399 = vpop.permute.xlu0 %398
      %400 = vrot.lane.b32.xlu0 %v344, 127
      %v401 = vpop.permute.xlu0 %400
      %402 = vrot.lane.b32.xlu0 %v343, 127
      %v403 = vpop.permute.xlu0 %402
      %404 = vrot.lane.b32.xlu0 %v337, 127
      %v405 = vpop.permute.xlu0 %404
      %406 = vrot.lane.b32.xlu0 %v345, 127
      %v407 = vpop.permute.xlu0 %406
      %vm408 = vcmask 1039360
      %v409 = vsel %vm408, %v397, %v399
      %v410 = vsel %vm408, %v399, %v401
      %v411 = vsel %vm408, %v403, %v405
      %v412 = vsel %vm408, %v405, %v407
      %421 = vrot.lane.b32.xlu0 %v364, 126
      %v422 = vpop.permute.xlu0 %421
      %423 = vrot.lane.b32.xlu0 %v358, 126
      %v424 = vpop.permute.xlu0 %423
      %425 = vrot.lane.b32.xlu0 %v366, 126
      %v426 = vpop.permute.xlu0 %425
      %427 = vrot.lane.b32.xlu0 %v365, 126
      %v428 = vpop.permute.xlu0 %427
      %429 = vrot.lane.b32.xlu0 %v359, 126
      %v430 = vpop.permute.xlu0 %429
      %431 = vrot.lane.b32.xlu0 %v367, 126
      %v432 = vpop.permute.xlu0 %431
      %vm433 = vcmask 1031168
      %v434 = vsel %vm433, %v422, %v424
      %v435 = vsel %vm433, %v424, %v426
      %v436 = vsel %vm433, %v428, %v430
      %v437 = vsel %vm433, %v430, %v432
      %446 = vrot.lane.b32.xlu0 %v388, 112
      %v447 = vpop.permute.xlu0 %446
      %448 = vrot.lane.b32.xlu0 %v380, 112
      %v449 = vpop.permute.xlu0 %448
      %450 = vrot.lane.b32.xlu0 %v390, 112
      %v451 = vpop.permute.xlu0 %450
      %452 = vrot.lane.b32.xlu0 %v389, 112
      %v453 = vpop.permute.xlu0 %452
      %454 = vrot.lane.b32.xlu0 %v381, 112
      %v455 = vpop.permute.xlu0 %454
      %456 = vrot.lane.b32.xlu0 %v391, 112
      %v457 = vpop.permute.xlu0 %456
      %vm458 = vcmask 916480
      %v459 = vsel %vm458, %v447, %v449
      %v460 = vsel %vm458, %v449, %v451
      %v461 = vsel %vm458, %v453, %v455
      %v462 = vsel %vm458, %v455, %v457
      %467 = vrot.lane.b32.xlu0 %v364, 110
      %v468 = vpop.permute.xlu0 %467
      %469 = vrot.lane.b32.xlu0 %v358, 110
      %v470 = vpop.permute.xlu0 %469
      %471 = vrot.lane.b32.xlu0 %v366, 110
      %v472 = vpop.permute.xlu0 %471
      %473 = vrot.lane.b32.xlu0 %v365, 110
      %v474 = vpop.permute.xlu0 %473
      %475 = vrot.lane.b32.xlu0 %v359, 110
      %v476 = vpop.permute.xlu0 %475
      %477 = vrot.lane.b32.xlu0 %v367, 110
      %v478 = vpop.permute.xlu0 %477
      %vm479 = vcmask 900096
      %v480 = vsel %vm479, %v468, %v470
      %v481 = vsel %vm479, %v470, %v472
      %v482 = vsel %vm479, %v474, %v476
      %v483 = vsel %vm479, %v476, %v478
      %488 = vrot.lane.b32.xlu0 %v388, 96
      %v489 = vpop.permute.xlu0 %488
      %490 = vrot.lane.b32.xlu0 %v380, 96
      %v491 = vpop.permute.xlu0 %490
      %492 = vrot.lane.b32.xlu0 %v390, 96
      %v493 = vpop.permute.xlu0 %492
      %494 = vrot.lane.b32.xlu0 %v389, 96
      %v495 = vpop.permute.xlu0 %494
      %496 = vrot.lane.b32.xlu0 %v381, 96
      %v497 = vpop.permute.xlu0 %496
      %498 = vrot.lane.b32.xlu0 %v391, 96
      %v499 = vpop.permute.xlu0 %498
      %vm500 = vcmask 785408
      %v501 = vsel %vm500, %v489, %v491
      %v502 = vsel %vm500, %v491, %v493
      %v503 = vsel %vm500, %v495, %v497
      %v504 = vsel %vm500, %v497, %v499
      %509 = vrot.lane.b32.xlu0 %v342, 95
      %v510 = vpop.permute.xlu0 %509
      %511 = vrot.lane.b32.xlu0 %v336, 95
      %v512 = vpop.permute.xlu0 %511
      %513 = vrot.lane.b32.xlu0 %v344, 95
      %v514 = vpop.permute.xlu0 %513
      %515 = vrot.lane.b32.xlu0 %v343, 95
      %v516 = vpop.permute.xlu0 %515
      %517 = vrot.lane.b32.xlu0 %v337, 95
      %v518 = vpop.permute.xlu0 %517
      %519 = vrot.lane.b32.xlu0 %v345, 95
      %v520 = vpop.permute.xlu0 %519
      %vm521 = vcmask 777216
      %v522 = vsel %vm521, %v510, %v512
      %v523 = vsel %vm521, %v512, %v514
      %v524 = vsel %vm521, %v516, %v518
      %v525 = vsel %vm521, %v518, %v520
      %530 = vrot.lane.b32.xlu0 %v364, 94
      %v531 = vpop.permute.xlu0 %530
      %532 = vrot.lane.b32.xlu0 %v358, 94
      %v533 = vpop.permute.xlu0 %532
      %534 = vrot.lane.b32.xlu0 %v366, 94
      %v535 = vpop.permute.xlu0 %534
      %536 = vrot.lane.b32.xlu0 %v365, 94
      %v537 = vpop.permute.xlu0 %536
      %538 = vrot.lane.b32.xlu0 %v359, 94
      %v539 = vpop.permute.xlu0 %538
      %540 = vrot.lane.b32.xlu0 %v367, 94
      %v541 = vpop.permute.xlu0 %540
      %vm542 = vcmask 769024
      %v543 = vsel %vm542, %v531, %v533
      %v544 = vsel %vm542, %v533, %v535
      %v545 = vsel %vm542, %v537, %v539
      %v546 = vsel %vm542, %v539, %v541
      %v551 = vld [vmem:[%s3] sm:$0xff]
      %v552 = vld [vmem:[%s3 + $0x8] sm:$0xff]
      %v553 = vld [vmem:[%s3 + $0x10] sm:$0xff]
      %v554 = vld [vmem:[%s3 + $0x18] sm:$0xff]
      %vm555 = vcmask 130048
      %v557 = vsel %vm555, %v552, 0
      %v560 = vsel %vm555, %v554, 0
      %562 = vmatprep.subr.mxu0 %v525
      %563 = vmatpush1.msra.mxu0 %v524
      %564 = vmatprep.subr.mxu0 %v523
      %565 = vmatpush1.msra.mxu0 %v522
      %566 = vmatprep.subr.mxu0 %v504
      %567 = vmatpush1.msra.mxu0 %v503
      %568 = vmatprep.subr.mxu0 %v502
      %569 = vmatpush1.msra.mxu0 %v501
      %570 = vmatprep.subr.mxu0 %v483
      %571 = vmatpush1.msra.mxu0 %v482
      %572 = vmatprep.subr.mxu0 %v481
      %573 = vmatpush1.msra.mxu0 %v480
      %574 = vmatprep.subr.mxu0 %v281
      %575 = vmatpush1.msra.mxu0 %v280
      %576 = vmatprep.subr.mxu0 %v279
      %577 = vmatpush1.msra.mxu0 %v278
      %578 = vmatprep.subr.mxu0 %v462
      %579 = vmatpush1.msra.mxu0 %v461
      %580 = vmatprep.subr.mxu0 %v460
      %581 = vmatpush1.msra.mxu0 %v459
      %582 = vmatprep.subr.mxu0 %v437
      %583 = vmatpush1.msra.mxu0 %v436
      %584 = vmatprep.subr.mxu0 %v435
      %585 = vmatpush1.msra.mxu0 %v434
      %586 = vmatprep.subr.mxu0 %v412
      %587 = vmatpush1.msra.mxu0 %v411
      %588 = vmatprep.subr.mxu0 %v410
      %589 = vmatpush1.msra.mxu0 %v409
      %590 = vmatprep.subr.mxu0 %v381
      %591 = vmatpush1.msra.mxu0 %v389
      %592 = vmatprep.subr.mxu0 %v380
      %593 = vmatpush1.msra.mxu0 %v388
      %594 = vmatprep.subr.mxu0 0.0
      %595 = vmatpush2.msra.mxu0 0.0
      %596 = vmatprep.subr.mxu0 0.0
      %597 = vmatpush2.msra.mxu0 0.0
      %598 = vmatprep.subr.mxu0 0.0
      %599 = vmatpush2.msra.mxu0 0.0
      %600 = vmatprep.subr.mxu0 0.0
      %601 = vmatpush2.msra.mxu0 0.0
      %602 = vmatprep.subr.mxu0 0.0
      %603 = vmatpush2.msra.mxu0 0.0
      %604 = vmatprep.subr.mxu0 0.0
      %605 = vmatpush2.msra.mxu0 0.0
      %606 = vmatprep.subr.mxu0 0.0
      %607 = vmatpush2.msra.mxu0 0.0
      %608 = vmatprep.subr.mxu0 0.0
      %609 = vmatpush2.msra.mxu0 0.0
      %610 = vmatprep.subr.mxu0 0.0
      %611 = vmatpush2.msra.mxu0 0.0
      %612 = vmatprep.subr.mxu0 0.0
      %613 = vmatpush2.msra.mxu0 0.0
      %614 = vmatprep.subr.mxu0 0.0
      %615 = vmatpush2.msra.mxu0 0.0
      %616 = vmatprep.subr.mxu0 0.0
      %617 = vmatpush2.msra.mxu0 0.0
      %618 = vmatprep.subr.mxu0 0.0
      %619 = vmatpush2.msra.mxu0 0.0
      %620 = vmatprep.subr.mxu0 0.0
      %621 = vmatpush2.msra.mxu0 0.0
      %622 = vmatprep.subr.mxu0 %v546
      %623 = vmatpush2.msra.mxu0 %v545
      %624 = vmatprep.subr.mxu0 %v544
      %625 = vmatpush2.msra.mxu0 %v543
      %626 = vmatprep.mubr.f32.mxu0 %v557
      %627 = vmatmul.mubr.f32.gmra.mxu0 %v551
      %v628 = vpop.f32.mrf.mxu0
      %v629 = vadd.f32 0.0, %v628
      %v630 = vpop.f32.mrf.mxu0
      %v631 = vadd.f32 0.0, %v630
      %632 = vmatprep.mubr.f32.mxu0 %v560
      %633 = vmatmul.mubr.f32.gmra.mxu0 %v553
      %v634 = vpop.f32.mrf.mxu0
      %v635 = vadd.f32 0.0, %v634
      %v636 = vpop.f32.mrf.mxu0
      %v637 = vadd.f32 0.0, %v636
      %638 = vdwg.mxu0
      %v639 = vsub.f32 %v278, %v280
      %v640 = vsub.f32 %v279, %v281
      %v641 = vadd.f32 %v639, %v640
      %642 = vadd.xlane.f32.xlu0 %v641
      %v643 = vpop.xlane.xlu0 %642
      %v644 = vmul.f32 %v643, 0.00390625
      %v645 = vxor.u32 %v644, 2147483648
      %v646 = vmul.f32 %v645, 1.442695
      %v647 = vpow.pop %v646
      %v648 = vadd.f32 %v647, 1.0
      %v649 = vrcp.pop %v648
      %v650 = vmul.f32 1.0, %v649
      %v651 = vsub.f32 1.0, %v650
      %v652 = vmul.f32 %v650, %v282
      %v653 = vmul.f32 %v650, %v283
      %v654 = vadd.f32 %v629, %v652
      %v655 = vadd.f32 %v631, %v653
      %v656 = vadd.f32 %v654, %v278
      %v657 = vadd.f32 %v655, %v279
      %658 = vst [vmem:[%s272] sm:$0xff] %v656
      %659 = vst [vmem:[%s272 + $0x8] sm:$0xff] %v657
      %v660 = vmul.f32 %v651, %v282
      %v661 = vmul.f32 %v651, %v283
      %v662 = vadd.f32 %v635, %v660
      %v663 = vadd.f32 %v637, %v661
      %v664 = vadd.f32 %v662, %v280
      %v665 = vadd.f32 %v663, %v281
      %666 = vst [vmem:[%s277] sm:$0xff] %v664
      %667 = vst [vmem:[%s277 + $0x8] sm:$0xff] %v665
      %p668 = scmp.lt.s32.totalorder %s17, 1
      %s669 = scalar_select %p668, %s17, 1
      %s670 = smul.addr %s669, 2
      %s671 = smul.addr %s670, 8
      %s672 = scalar_lea.vmem %s4, %s671
      %p673 = scmp.lt.s32.totalorder %s17, 1
      %s674 = scalar_select %p673, %s17, 1
      %s675 = smul.addr %s674, 2
      %s676 = smul.addr %s675, 8
      %s677 = scalar_lea.vmem %s5, %s676
      // Predicated region
      $region37: #{cross_layer_forward.1} parent=35 // pred_check
        %p678 = pneg %p134
      $region38: #{cross_layer_forward.1} parent=35 // pred_check_branch
        %680 = sbr.rel (%p678) target = $region40
      $region39: #{cross_layer_forward.1} parent=35 // pred_region
        _
      $region40: #{cross_layer_forward.1} parent=35 // pred_fallthru
        _
      // Predicated region
      $region41: #{cross_layer_forward.1} parent=35 // pred_check
        %p681 = pneg %p160
      $region42: #{cross_layer_forward.1} parent=35 // pred_check_branch
        %683 = sbr.rel (%p681) target = $region44
      $region43: #{cross_layer_forward.1} parent=35 // pred_region
        _
      $region44: #{cross_layer_forward.1} parent=35 // pred_fallthru
        _
    $region36: #{cross_layer_forward.1} parent=5 // pred_fallthru
      _
    %p684 = scmp.le.s32.totalorder 2, %s12
    // Predicated region
    $region45: #{cross_layer_forward.1} parent=5 // pred_check
      %p685 = pneg %p684
    $region46: #{cross_layer_forward.1} parent=5 // pred_check_branch
      %687 = sbr.rel (%p685) target = $region48
    $region47: #{cross_layer_forward.1} parent=5 // pred_region
      %s688 = ssub.s32 %s12, 2
      // Predicated region
      $region49: #{cross_layer_forward.1} parent=47 // pred_check
        %p689 = pneg %p140
      $region50: #{cross_layer_forward.1} parent=47 // pred_check_branch
        %691 = sbr.rel (%p689) target = $region52
      $region51: #{cross_layer_forward.1} parent=47 // pred_region
        %p692 = scmp.lt.s32.totalorder %s18, 1
        %s693 = scalar_select %p692, %s18, 1
        %s694 = smul.addr %s693, 2
        %s695 = smul.addr %s694, 8
        %s696 = scalar_lea.vmem %s4, %s695
      $region52: #{cross_layer_forward.1} parent=47 // pred_fallthru
        _
      // Predicated region
      $region53: #{cross_layer_forward.1} parent=47 // pred_check
        %p697 = pneg %p166
      $region54: #{cross_layer_forward.1} parent=47 // pred_check_branch
        %699 = sbr.rel (%p697) target = $region56
      $region55: #{cross_layer_forward.1} parent=47 // pred_region
        %p700 = scmp.lt.s32.totalorder %s18, 1
        %s701 = scalar_select %p700, %s18, 1
        %s702 = smul.addr %s701, 2
        %s703 = smul.addr %s702, 8
        %s704 = scalar_lea.vmem %s5, %s703
      $region56: #{cross_layer_forward.1} parent=47 // pred_fallthru
        _
    $region48: #{cross_layer_forward.1} parent=5 // pred_fallthru
      _
  $region6: #{cross_layer_forward.1} parent=0 // loop_footer
    %s16 = sadd.s32 1, %s12
  $region7: #{cross_layer_forward.1} parent=0 // loop_footer_branch
    %11 = sbr.rel target = $region3
  $region8: #{cross_layer_forward.1} parent=0 // loop_exit
    _

</llo_original>
